<compile_context>
chip_gen: v6e
topology: v6e:2x2x1
jax: 0.10.0
libtpu: 0.0.40
codegen_flags: <defaults>
</compile_context>

<pallas_src>
import functools

import jax
import jax.numpy as jnp
from jax.experimental import pallas as pl
from jax.experimental.pallas import tpu as pltpu


def _fpn_head_kernel(p0_ref, w0_ref, w1_ref, o_ref, mid_ref, patch_ref, *,
                     dilation, ksize, w_pitch, q_out):
    """Fused block0 -> ReLU -> block1 -> ReLU for one batch element.

    p0_ref   : (K*K*Cin, L)     block0 im2col patches over the zero-padded
                                intermediate domain (channel-major, lane-dense)
    w0_ref   : (Cmid, K*K*Cin)  block0 weights as a single matrix
    w1_ref   : (Cout, K*K*Cmid) block1 weights as a single matrix
    o_ref    : (Cout, Q)        pitched output (Q = h_out * w_pitch), lane-dense
    mid_ref  : (Cmid, L)        VMEM scratch: pitched, zero-padded intermediate
    patch_ref: (K*K*Cmid, Q)    VMEM scratch: block1 im2col patches
    """
    c_mid = w0_ref.shape[0]

    # ---- block0: one channel-major matmul + ReLU ------------------------------
    # Halo / tail positions of the intermediate have all-zero patch columns, so
    # relu(0 @ w) = 0 gives the zero padding for free (bias=False) — no memset.
    mid_ref[...] = jnp.maximum(
        jnp.dot(w0_ref[...], p0_ref[...], preferred_element_type=jnp.float32),
        0.0)

    # ---- block1 im2col: each dilated tap is a contiguous window ---------------
    # In the pitched flattened layout, tap (kh, kw) for every output position is
    # mid[:, off : off + Q] with off = (kh*w_pitch + kw)*dilation: a dense,
    # reshape-free row-block copy into the patch matrix (sublane offsets t*Cmid
    # are multiples of 8, lane dim is the dense Q).
    for kh in range(ksize):
        for kw in range(ksize):
            t = kh * ksize + kw
            off = (kh * w_pitch + kw) * dilation
            patch_ref[t * c_mid:(t + 1) * c_mid, :] = mid_ref[:, off:off + q_out]

    # ---- block1: one matmul + ReLU, lane-dense store --------------------------
    o_ref[...] = jnp.maximum(
        jnp.dot(w1_ref[...], patch_ref[...], preferred_element_type=jnp.float32),
        0.0).astype(o_ref.dtype)


def fpn_head_forward(x_nchw, w0_oihw, w1_oihw, *, dilation=5, ksize=3, padding=1):
    """FPNHead forward: relu(conv0(x)); relu(conv1(.)).  NCHW in / NCHW out."""
    N, c_in, H, W = x_nchw.shape
    c_mid = w0_oihw.shape[0]
    c_out = w1_oihw.shape[0]
    d, k, p = dilation, ksize, padding

    shrink = d * (k - 1) - 2 * p                       # = 8 for K=3, d=5, p=1
    h_mid, w_mid = H - shrink, W - shrink
    h_out, w_out = h_mid - shrink, w_mid - shrink
    assert h_out > 0 and w_out > 0, "input too small for two dilation-5/pad-1 convs"

    hp_mid, wp_mid = h_mid + 2 * p, w_mid + 2 * p      # zero-padded intermediate dims
    q_out = h_out * wp_mid                             # pitched output length
    l_mid = hp_mid * wp_mid + (k - 1) * d              # pitched intermediate length
                                                       # (+ tail so tap windows fit)
    kk = k * k

    # --- wrapper-side layout plumbing (no FLOPs): pad + im2col, channel-major ---
    xp = jnp.pad(x_nchw, ((0, 0), (0, 0), (p, p), (p, p)))       # (N, Cin, H+2p, W+2p)
    cols = []
    for kh in range(k):
        for kw in range(k):
            tap = xp[:, :, kh * d: kh * d + h_mid, kw * d: kw * d + w_mid]
            # Zero-pad to the padded intermediate domain: the zero columns make
            # the kernel's matmul emit the intermediate's zero halo directly.
            tap = jnp.pad(tap, ((0, 0), (0, 0), (p, p), (p, p)))
            cols.append(tap.reshape(N, c_in, hp_mid * wp_mid))
    p0 = jnp.concatenate(cols, axis=1)                            # (N, K*K*Cin, hp*wp)
    p0 = jnp.pad(p0, ((0, 0), (0, 0), (0, l_mid - hp_mid * wp_mid)))

    # Weights packed as single matrices, tap-major feature ordering (t*C + c).
    w0p = jnp.transpose(w0_oihw, (0, 2, 3, 1)).reshape(c_mid, kk * c_in)
    w1p = jnp.transpose(w1_oihw, (0, 2, 3, 1)).reshape(c_out, kk * c_mid)

    kernel = functools.partial(_fpn_head_kernel, dilation=d, ksize=k,
                               w_pitch=wp_mid, q_out=q_out)

    out_pitched = pl.pallas_call(
        kernel,
        out_shape=jax.ShapeDtypeStruct((N, c_out, q_out), x_nchw.dtype),
        grid=(N,),
        in_specs=[
            pl.BlockSpec((None, kk * c_in, l_mid), lambda n: (n, 0, 0)),
            pl.BlockSpec((c_mid, kk * c_in), lambda n: (0, 0)),
            pl.BlockSpec((c_out, kk * c_mid), lambda n: (0, 0)),
        ],
        out_specs=pl.BlockSpec((None, c_out, q_out), lambda n: (n, 0, 0)),
        scratch_shapes=[
            pltpu.VMEM((c_mid, l_mid), jnp.float32),      # pitched intermediate
            pltpu.VMEM((kk * c_mid, q_out), jnp.float32),  # block1 im2col patches
        ],
        compiler_params=pltpu.CompilerParams(dimension_semantics=("parallel",)),
    )(p0, w0p, w1p)

    # Pitched (row stride wp_mid) -> dense NCHW: free reshape + one tiny slice.
    out = out_pitched.reshape(N, c_out, h_out, wp_mid)[:, :, :, :w_out]
    return out


def _reference_forward(x_nchw, w0_oihw, w1_oihw):
    """Pure-JAX reference (lax.conv_general_dilated) for correctness check."""
    def conv(x, w):
        return jax.lax.conv_general_dilated(
            x, w, window_strides=(1, 1), padding=((1, 1), (1, 1)),
            rhs_dilation=(5, 5),
            dimension_numbers=("NCHW", "OIHW", "NCHW"))
    y = jax.nn.relu(conv(x_nchw, w0_oihw))
    y = jax.nn.relu(conv(y, w1_oihw))
    return y


if __name__ == "__main__":
    # dilation=5 / pad=1 shrinks each spatial dim by 8 per conv:
    # 32x32 input -> 24x24 intermediate -> 16x16 output.
    N, num_in, num_mid, num_out, H, W, K = 2, 4, 8, 4, 32, 32, 3

    key = jax.random.PRNGKey(0)
    kx, k0, k1 = jax.random.split(key, 3)
    x = jax.random.normal(kx, (N, num_in, H, W), dtype=jnp.float32)
    # Deterministic synthetic weights (PyTorch OIHW convention, bias=False).
    w0 = 0.1 * jax.random.normal(k0, (num_mid, num_in, K, K), dtype=jnp.float32)
    w1 = 0.1 * jax.random.normal(k1, (num_out, num_mid, K, K), dtype=jnp.float32)

    fpn_head = jax.jit(fpn_head_forward)
    out = jax.block_until_ready(fpn_head(x, w0, w1))

    ref = jax.block_until_ready(_reference_forward(x, w0, w1))
    assert out.shape == ref.shape, (out.shape, ref.shape)
    assert jnp.allclose(out, ref, rtol=1e-4, atol=1e-4), "mismatch vs reference"

    print("KERNEL_OK")
</pallas_src>

<mosaic_0001>
module attributes {stable_mosaic.version = 11 : i64} {
  func.func @_fpn_head_kernel(%arg0: i32, %arg1: memref<1x36x686xf32, #tpu.memory_space<vmem>>, %arg2: memref<8x36xf32, #tpu.memory_space<vmem>>, %arg3: memref<4x72xf32, #tpu.memory_space<vmem>>, %arg4: memref<1x4x416xf32, #tpu.memory_space<vmem>>, %arg5: memref<8x686xf32, #tpu.memory_space<vmem>>, %arg6: memref<72x416xf32, #tpu.memory_space<vmem>>) attributes {dimension_semantics = [#tpu.dimension_semantics<parallel>], iteration_bounds = array<i64: 2>, scalar_prefetch = 0 : i64, scratch_operands = 2 : i64, tpu.core_type = #tpu.core_type<tc>, window_params = [{transform_indices = @transform_0, window_bounds = array<i64: 1, 36, 686>}, {pipeline_mode = #tpu.pipeline_mode<synchronous>, transform_indices = @transform_1, window_bounds = array<i64: 8, 36>}, {pipeline_mode = #tpu.pipeline_mode<synchronous>, transform_indices = @transform_2, window_bounds = array<i64: 4, 72>}, {transform_indices = @transform_3, window_bounds = array<i64: 1, 4, 416>}]} {
    %c0 = arith.constant 0 : index
    %c0_0 = arith.constant 0 : index
    %0 = vector.load %arg2[%c0, %c0_0] : memref<8x36xf32, #tpu.memory_space<vmem>>, vector<8x36xf32>
    %c0_1 = arith.constant 0 : index
    %c0_2 = arith.constant 0 : index
    %c0_3 = arith.constant 0 : index
    %1 = vector.load %arg1[%c0_1, %c0_2, %c0_3] : memref<1x36x686xf32, #tpu.memory_space<vmem>>, vector<1x36x686xf32>
    %2 = vector.shape_cast %1 : vector<1x36x686xf32> to vector<36x686xf32>
    %cst = arith.constant dense<0.000000e+00> : vector<8x686xf32>
    %3 = tpu.matmul %0, %2, %cst {dimension_numbers = #tpu.dot_dimension_numbers<[1], [0], [0], [1], [0, 0, 1, 1], [], []>} : vector<8x36xf32>, vector<36x686xf32>, vector<8x686xf32> -> vector<8x686xf32>
    %cst_4 = arith.constant 0.000000e+00 : f32
    %4 = vector.broadcast %cst_4 : f32 to vector<8x686xf32>
    %5 = arith.maximumf %3, %4 : vector<8x686xf32>
    %c0_5 = arith.constant 0 : index
    %c0_6 = arith.constant 0 : index
    %6 = vector.load %arg5[%c0_5, %c0_6] : memref<8x686xf32, #tpu.memory_space<vmem>>, vector<8x686xf32>
    tpu.vector_store %arg5[%c0_5, %c0_6], %5 {strides = array<i32>} : memref<8x686xf32, #tpu.memory_space<vmem>>, vector<8x686xf32>,
    %c0_7 = arith.constant 0 : index
    %c0_8 = arith.constant 0 : index
    %7 = vector.load %arg5[%c0_7, %c0_8] : memref<8x686xf32, #tpu.memory_space<vmem>>, vector<8x416xf32>
    %c0_9 = arith.constant 0 : index
    %c0_10 = arith.constant 0 : index
    %8 = vector.load %arg6[%c0_9, %c0_10] : memref<72x416xf32, #tpu.memory_space<vmem>>, vector<8x416xf32>
    tpu.vector_store %arg6[%c0_9, %c0_10], %7 {strides = array<i32>} : memref<72x416xf32, #tpu.memory_space<vmem>>, vector<8x416xf32>,
    %c0_11 = arith.constant 0 : index
    %c5 = arith.constant 5 : index
    %9 = vector.load %arg5[%c0_11, %c5] : memref<8x686xf32, #tpu.memory_space<vmem>>, vector<8x416xf32>
    %c8 = arith.constant 8 : index
    %c0_12 = arith.constant 0 : index
    %10 = vector.load %arg6[%c8, %c0_12] : memref<72x416xf32, #tpu.memory_space<vmem>>, vector<8x416xf32>
    tpu.vector_store %arg6[%c8, %c0_12], %9 {strides = array<i32>} : memref<72x416xf32, #tpu.memory_space<vmem>>, vector<8x416xf32>,
    %c0_13 = arith.constant 0 : index
    %c10 = arith.constant 10 : index
    %11 = vector.load %arg5[%c0_13, %c10] : memref<8x686xf32, #tpu.memory_space<vmem>>, vector<8x416xf32>
    %c16 = arith.constant 16 : index
    %c0_14 = arith.constant 0 : index
    %12 = vector.load %arg6[%c16, %c0_14] : memref<72x416xf32, #tpu.memory_space<vmem>>, vector<8x416xf32>
    tpu.vector_store %arg6[%c16, %c0_14], %11 {strides = array<i32>} : memref<72x416xf32, #tpu.memory_space<vmem>>, vector<8x416xf32>,
    %c0_15 = arith.constant 0 : index
    %c130 = arith.constant 130 : index
    %13 = vector.load %arg5[%c0_15, %c130] : memref<8x686xf32, #tpu.memory_space<vmem>>, vector<8x416xf32>
    %c24 = arith.constant 24 : index
    %c0_16 = arith.constant 0 : index
    %14 = vector.load %arg6[%c24, %c0_16] : memref<72x416xf32, #tpu.memory_space<vmem>>, vector<8x416xf32>
    tpu.vector_store %arg6[%c24, %c0_16], %13 {strides = array<i32>} : memref<72x416xf32, #tpu.memory_space<vmem>>, vector<8x416xf32>,
    %c0_17 = arith.constant 0 : index
    %c135 = arith.constant 135 : index
    %15 = vector.load %arg5[%c0_17, %c135] : memref<8x686xf32, #tpu.memory_space<vmem>>, vector<8x416xf32>
    %c32 = arith.constant 32 : index
    %c0_18 = arith.constant 0 : index
    %16 = vector.load %arg6[%c32, %c0_18] : memref<72x416xf32, #tpu.memory_space<vmem>>, vector<8x416xf32>
    tpu.vector_store %arg6[%c32, %c0_18], %15 {strides = array<i32>} : memref<72x416xf32, #tpu.memory_space<vmem>>, vector<8x416xf32>,
    %c0_19 = arith.constant 0 : index
    %c140 = arith.constant 140 : index
    %17 = vector.load %arg5[%c0_19, %c140] : memref<8x686xf32, #tpu.memory_space<vmem>>, vector<8x416xf32>
    %c40 = arith.constant 40 : index
    %c0_20 = arith.constant 0 : index
    %18 = vector.load %arg6[%c40, %c0_20] : memref<72x416xf32, #tpu.memory_space<vmem>>, vector<8x416xf32>
    tpu.vector_store %arg6[%c40, %c0_20], %17 {strides = array<i32>} : memref<72x416xf32, #tpu.memory_space<vmem>>, vector<8x416xf32>,
    %c0_21 = arith.constant 0 : index
    %c260 = arith.constant 260 : index
    %19 = vector.load %arg5[%c0_21, %c260] : memref<8x686xf32, #tpu.memory_space<vmem>>, vector<8x416xf32>
    %c48 = arith.constant 48 : index
    %c0_22 = arith.constant 0 : index
    %20 = vector.load %arg6[%c48, %c0_22] : memref<72x416xf32, #tpu.memory_space<vmem>>, vector<8x416xf32>
    tpu.vector_store %arg6[%c48, %c0_22], %19 {strides = array<i32>} : memref<72x416xf32, #tpu.memory_space<vmem>>, vector<8x416xf32>,
    %c0_23 = arith.constant 0 : index
    %c265 = arith.constant 265 : index
    %21 = vector.load %arg5[%c0_23, %c265] : memref<8x686xf32, #tpu.memory_space<vmem>>, vector<8x416xf32>
    %c56 = arith.constant 56 : index
    %c0_24 = arith.constant 0 : index
    %22 = vector.load %arg6[%c56, %c0_24] : memref<72x416xf32, #tpu.memory_space<vmem>>, vector<8x416xf32>
    tpu.vector_store %arg6[%c56, %c0_24], %21 {strides = array<i32>} : memref<72x416xf32, #tpu.memory_space<vmem>>, vector<8x416xf32>,
    %c0_25 = arith.constant 0 : index
    %c270 = arith.constant 270 : index
    %23 = vector.load %arg5[%c0_25, %c270] : memref<8x686xf32, #tpu.memory_space<vmem>>, vector<8x416xf32>
    %c64 = arith.constant 64 : index
    %c0_26 = arith.constant 0 : index
    %24 = vector.load %arg6[%c64, %c0_26] : memref<72x416xf32, #tpu.memory_space<vmem>>, vector<8x416xf32>
    tpu.vector_store %arg6[%c64, %c0_26], %23 {strides = array<i32>} : memref<72x416xf32, #tpu.memory_space<vmem>>, vector<8x416xf32>,
    %c0_27 = arith.constant 0 : index
    %c0_28 = arith.constant 0 : index
    %25 = vector.load %arg3[%c0_27, %c0_28] : memref<4x72xf32, #tpu.memory_space<vmem>>, vector<4x72xf32>
    %c0_29 = arith.constant 0 : index
    %c0_30 = arith.constant 0 : index
    %26 = vector.load %arg6[%c0_29, %c0_30] : memref<72x416xf32, #tpu.memory_space<vmem>>, vector<72x416xf32>
    %cst_31 = arith.constant dense<0.000000e+00> : vector<4x416xf32>
    %27 = tpu.matmul %25, %26, %cst_31 {dimension_numbers = #tpu.dot_dimension_numbers<[1], [0], [0], [1], [0, 0, 1, 1], [], []>} : vector<4x72xf32>, vector<72x416xf32>, vector<4x416xf32> -> vector<4x416xf32>
    %cst_32 = arith.constant 0.000000e+00 : f32
    %28 = vector.broadcast %cst_32 : f32 to vector<4x416xf32>
    %29 = arith.maximumf %27, %28 : vector<4x416xf32>
    %c0_33 = arith.constant 0 : index
    %c0_34 = arith.constant 0 : index
    %c0_35 = arith.constant 0 : index
    %30 = vector.load %arg4[%c0_33, %c0_34, %c0_35] : memref<1x4x416xf32, #tpu.memory_space<vmem>>, vector<1x4x416xf32>
    %31 = vector.shape_cast %30 : vector<1x4x416xf32> to vector<4x416xf32>
    %32 = vector.shape_cast %29 : vector<4x416xf32> to vector<1x4x416xf32>
    tpu.vector_store %arg4[%c0_33, %c0_34, %c0_35], %32 {strides = array<i32>} : memref<1x4x416xf32, #tpu.memory_space<vmem>>, vector<1x4x416xf32>,
    return
  }
  func.func @transform_0(%arg0: i32) -> (i32, i32, i32) {
    %c0_i32 = arith.constant 0 : i32
    %c0_i32_0 = arith.constant 0 : i32
    %c0_i32_1 = arith.constant 0 : i32
    return %arg0, %c0_i32, %c0_i32_0 : i32, i32, i32
  }
  func.func @transform_1(%arg0: i32) -> (i32, i32) {
    %c0_i32 = arith.constant 0 : i32
    %c0_i32_0 = arith.constant 0 : i32
    %c0_i32_1 = arith.constant 0 : i32
    return %c0_i32, %c0_i32_0 : i32, i32
  }
  func.func @transform_2(%arg0: i32) -> (i32, i32) {
    %c0_i32 = arith.constant 0 : i32
    %c0_i32_0 = arith.constant 0 : i32
    %c0_i32_1 = arith.constant 0 : i32
    return %c0_i32, %c0_i32_0 : i32, i32
  }
  func.func @transform_3(%arg0: i32) -> (i32, i32, i32) {
    %c0_i32 = arith.constant 0 : i32
    %c0_i32_0 = arith.constant 0 : i32
    %c0_i32_1 = arith.constant 0 : i32
    return %arg0, %c0_i32, %c0_i32_0 : i32, i32, i32
  }
}

</mosaic_0001>

<llo_original>
// kernel: fpn_head_forward.1
$region0: #{fpn_head_forward.1}
  #allocation0 [shape = 'u32[]', space=smem, size = 0x4, offset = 0x4, fixed_abs, tag = 'smem constant byte address 0x4 - core index']
  #allocation1 [shape = 'u32[144,128]{1,0:T(1,128)}', space=vmem, size = 0x12000, scoped, tag = 'internal scratch']
  #allocation2 [shape = 'f32[8,686]{1,0:T(8,128)}', space=vmem, size = 0x6000, scoped, tag = 'scratch operand']
  #allocation3 [shape = 'f32[72,416]{1,0:T(8,128)}', space=vmem, size = 0x24000, scoped, tag = 'scratch operand']
  %s0 = inlined_call_operand.vmem [shape: f32[2,36,686], index: 0, kind: input, shape index: {}]
  %s1 = inlined_call_operand.vmem [shape: f32[8,36], index: 1, kind: input, shape index: {}]
  %s2 = inlined_call_operand.vmem [shape: f32[4,72], index: 2, kind: input, shape index: {}]
  %s3 = inlined_call_operand.vmem [shape: f32[2,4,416], index: 3, kind: output, shape index: {}]
  %s4 = sld [smem:[#allocation0]]
  $region45: #{fpn_head_forward.1} parent=0
    _
  %s6 = ssub.s32 1, %s4
  %s7 = scalar_select 0, %s6, %s4
  loop: start=0, step=1, limit=4
  $region2: #{fpn_head_forward.1} parent=0 // loop_pre_header
    _
  $region3: #{fpn_head_forward.1} parent=0 // loop_header
    %s9 = sphi 0, %s13
    %p10 = scmp.ge.s32.totalorder %s9, 4
    %s19 = sphi 0, %s21
    %s22 = sphi 0, %s19
    %s23 = sphi 0, %s22
    %s39 = sphi 0, %s23
    %s43 = sphi 0, %s43
    %s45 = sphi 0, %s43
    %s46 = sphi 0, %s45
    %s60 = sphi 0, %s46
    %s64 = sphi 0, %s64
    %s66 = sphi 0, %s64
    %s67 = sphi 0, %s66
    %s81 = sphi 0, %s67
    %s87 = sphi 0, %s89
    %s90 = sphi 0, %s87
    %s91 = sphi 0, %s90
    %s107 = sphi 0, %s91
  $region4: #{fpn_head_forward.1} parent=0 // loop_header_branch
    %12 = sbr.rel (%p10) target = $region8
  $region5: #{fpn_head_forward.1} parent=0 // loop_body
    %s14 = ssub.s32 %s9, 1
    %s15 = ssub.s32 %s9, 2
    %s16 = sadd.s32 %s9, 1
    %s17 = ssub.s32 %s9, %s16
    %p18 = scmp.eq.s32.totalorder %s17, 0
    %s20 = sadd.s32 %s19, 1
    %s21 = scalar_select %p18, %s19, %s20
    %p24 = pneg %p18
    %p25 = scmp.eq.s32.totalorder %s9, 1
    %p26 = por %p24, %p25
    %p27 = scmp.ne.s32.totalorder %s19, %s22
    %p28 = scmp.eq.s32.totalorder %s9, 0
    %p29 = por %p27, %p28
    %p30 = scmp.ne.s32.totalorder %s19, %s22
    %p31 = scmp.eq.s32.totalorder %s14, 1
    %p32 = por %p30, %p31
    %p33 = scmp.ne.s32.totalorder %s22, %s23
    %p34 = scmp.eq.s32.totalorder %s14, 0
    %p35 = por %p33, %p34
    %p36 = scmp.ne.s32.totalorder %s22, %s23
    %p37 = scmp.eq.s32.totalorder %s15, 1
    %p38 = por %p36, %p37
    %p40 = scmp.ne.s32.totalorder %s23, %s39
    %p41 = scmp.eq.s32.totalorder %s15, 0
    %p42 = por %p40, %p41
    %s44 = sadd.s32 %s43, 1
    %p47 = scmp.eq.s32.totalorder %s9, 1
    %p48 = scmp.ne.s32.totalorder %s43, %s45
    %p49 = scmp.eq.s32.totalorder %s9, 0
    %p50 = por %p48, %p49
    %p51 = scmp.ne.s32.totalorder %s43, %s45
    %p52 = scmp.eq.s32.totalorder %s14, 1
    %p53 = por %p51, %p52
    %p54 = scmp.ne.s32.totalorder %s45, %s46
    %p55 = scmp.eq.s32.totalorder %s14, 0
    %p56 = por %p54, %p55
    %p57 = scmp.ne.s32.totalorder %s45, %s46
    %p58 = scmp.eq.s32.totalorder %s15, 1
    %p59 = por %p57, %p58
    %p61 = scmp.ne.s32.totalorder %s46, %s60
    %p62 = scmp.eq.s32.totalorder %s15, 0
    %p63 = por %p61, %p62
    %s65 = sadd.s32 %s64, 1
    %p68 = scmp.eq.s32.totalorder %s9, 1
    %p69 = scmp.ne.s32.totalorder %s64, %s66
    %p70 = scmp.eq.s32.totalorder %s9, 0
    %p71 = por %p69, %p70
    %p72 = scmp.ne.s32.totalorder %s64, %s66
    %p73 = scmp.eq.s32.totalorder %s14, 1
    %p74 = por %p72, %p73
    %p75 = scmp.ne.s32.totalorder %s66, %s67
    %p76 = scmp.eq.s32.totalorder %s14, 0
    %p77 = por %p75, %p76
    %p78 = scmp.ne.s32.totalorder %s66, %s67
    %p79 = scmp.eq.s32.totalorder %s15, 1
    %p80 = por %p78, %p79
    %p82 = scmp.ne.s32.totalorder %s67, %s81
    %p83 = scmp.eq.s32.totalorder %s15, 0
    %p84 = por %p82, %p83
    %s85 = ssub.s32 %s9, %s16
    %p86 = scmp.eq.s32.totalorder %s85, 0
    %s88 = sadd.s32 %s87, 1
    %s89 = scalar_select %p86, %s87, %s88
    %p92 = pneg %p86
    %p93 = scmp.eq.s32.totalorder %s9, 1
    %p94 = por %p92, %p93
    %p95 = scmp.ne.s32.totalorder %s87, %s90
    %p96 = scmp.eq.s32.totalorder %s9, 0
    %p97 = por %p95, %p96
    %p98 = scmp.ne.s32.totalorder %s87, %s90
    %p99 = scmp.eq.s32.totalorder %s14, 1
    %p100 = por %p98, %p99
    %p101 = scmp.ne.s32.totalorder %s90, %s91
    %p102 = scmp.eq.s32.totalorder %s14, 0
    %p103 = por %p101, %p102
    %p104 = scmp.ne.s32.totalorder %s90, %s91
    %p105 = scmp.eq.s32.totalorder %s15, 1
    %p106 = por %p104, %p105
    %p108 = scmp.ne.s32.totalorder %s91, %s107
    %p109 = scmp.eq.s32.totalorder %s15, 0
    %p110 = por %p108, %p109
    %p111 = scmp.le.s32.totalorder 1, %s9
    %p112 = scmp.lt.s32.totalorder %s9, 3
    %p113 = pnand %p111, %p112
    %p114 = pneg %p113
    // Predicated region
    $region9: #{fpn_head_forward.1} parent=5 // pred_check
      _
    $region10: #{fpn_head_forward.1} parent=5 // pred_check_branch
      %116 = sbr.rel (%p113) target = $region12
    $region11: #{fpn_head_forward.1} parent=5 // pred_region
      %s117 = ssub.s32 %s9, 1
      // Predicated region
      $region13: #{fpn_head_forward.1} parent=11 // pred_check
        %p118 = pneg %p56
      $region14: #{fpn_head_forward.1} parent=11 // pred_check_branch
        %120 = sbr.rel (%p118) target = $region16
      $region15: #{fpn_head_forward.1} parent=11 // pred_region
        _
      $region16: #{fpn_head_forward.1} parent=11 // pred_fallthru
        _
      // Predicated region
      $region17: #{fpn_head_forward.1} parent=11 // pred_check
        %p121 = pneg %p77
      $region18: #{fpn_head_forward.1} parent=11 // pred_check_branch
        %123 = sbr.rel (%p121) target = $region20
      $region19: #{fpn_head_forward.1} parent=11 // pred_region
        _
      $region20: #{fpn_head_forward.1} parent=11 // pred_fallthru
        _
    $region12: #{fpn_head_forward.1} parent=5 // pred_fallthru
      _
    %p124 = scmp.lt.s32.totalorder %s9, 2
    // Predicated region
    $region21: #{fpn_head_forward.1} parent=5 // pred_check
      %p125 = pneg %p124
    $region22: #{fpn_head_forward.1} parent=5 // pred_check_branch
      %127 = sbr.rel (%p125) target = $region24
    $region23: #{fpn_head_forward.1} parent=5 // pred_region
      // Predicated region
      $region25: #{fpn_head_forward.1} parent=23 // pred_check
        %p128 = pneg %p29
      $region26: #{fpn_head_forward.1} parent=23 // pred_check_branch
        %130 = sbr.rel (%p128) target = $region28
      $region27: #{fpn_head_forward.1} parent=23 // pred_region
        %p131 = scmp.lt.s32.totalorder %s9, 1
        %s132 = scalar_select %p131, %s9, 1
        %s133 = smul.addr %s132, 30
        %s134 = smul.addr %s133, 8
        %s135 = scalar_lea.vmem %s0, %s134
      $region28: #{fpn_head_forward.1} parent=23 // pred_fallthru
        _
    $region24: #{fpn_head_forward.1} parent=5 // pred_fallthru
      _
    %p136 = scmp.le.s32.totalorder 1, %s9
    %p137 = scmp.lt.s32.totalorder %s9, 3
    %p138 = pnand %p136, %p137
    %p139 = pneg %p138
    // Predicated region
    $region29: #{fpn_head_forward.1} parent=5 // pred_check
      _
    $region30: #{fpn_head_forward.1} parent=5 // pred_check_branch
      %141 = sbr.rel (%p138) target = $region32
    $region31: #{fpn_head_forward.1} parent=5 // pred_region
      %s142 = ssub.s32 %s9, 1
      %p143 = scmp.lt.s32.totalorder %s14, 1
      %s144 = scalar_select %p143, %s14, 1
      %s145 = smul.addr %s144, 30
      %s146 = smul.addr %s145, 8
      %s147 = scalar_lea.vmem %s0, %s146
      %p148 = pneg %p35
      %p149 = pneg %p32
      %p150 = pneg %p56
      %p151 = pneg %p53
      %p152 = pneg %p77
      %p153 = pneg %p74
      %p154 = pneg %p103
      %p155 = pneg %p100
      %p156 = scmp.lt.s32.totalorder %s14, 1
      %s157 = scalar_select %p156, %s14, 1
      %s158 = smul.addr %s157, 4
      %s159 = smul.addr %s158, 4
      %s160 = scalar_lea.vmem %s3, %s159
      %p161 = scmp.lt.s32.totalorder %s14, 1
      %s162 = scalar_select %p161, %s14, 1
      %s163 = smul.addr %s162, 30
      %s164 = smul.addr %s163, 8
      %s165 = scalar_lea.vmem %s0, %s164
      %p166 = scmp.lt.s32.totalorder %s14, 1
      %s167 = scalar_select %p166, %s14, 1
      %s168 = smul.addr %s167, 4
      %s169 = smul.addr %s168, 4
      %s170 = scalar_lea.vmem %s3, %s169
      %v171 = vld [vmem:[%s1] sm:$0xff]
      %v172 = vld [vmem:[%s165] sm:$0xff]
      %v173 = vld [vmem:[%s165 + $0x8] sm:$0xff]
      %v174 = vld [vmem:[%s165 + $0x10] sm:$0xff]
      %v175 = vld [vmem:[%s165 + $0x18] sm:$0xff]
      %v176 = vld [vmem:[%s165 + $0x20] sm:$0xff]
      %v177 = vld [vmem:[%s165 + $0x28] sm:$0xff]
      %v178 = vld [vmem:[%s165 + $0x30] sm:$0xff]
      %v179 = vld [vmem:[%s165 + $0x38] sm:$0xff]
      %v180 = vld [vmem:[%s165 + $0x40] sm:$0xff]
      %v181 = vld [vmem:[%s165 + $0x48] sm:$0xff]
      %v182 = vld [vmem:[%s165 + $0x50] sm:$0xff]
      %v183 = vld [vmem:[%s165 + $0x58] sm:$0xff]
      %v184 = vld [vmem:[%s165 + $0x60] sm:$0xff]
      %v185 = vld [vmem:[%s165 + $0x68] sm:$0xff]
      %v186 = vld [vmem:[%s165 + $0x70] sm:$0xff]
      %v187 = vld [vmem:[%s165 + $0x78] sm:$0xff]
      %v188 = vld [vmem:[%s165 + $0x80] sm:$0xff]
      %v189 = vld [vmem:[%s165 + $0x88] sm:$0xff]
      %v190 = vld [vmem:[%s165 + $0x90] sm:$0xff]
      %v191 = vld [vmem:[%s165 + $0x98] sm:$0xff]
      %v192 = vld [vmem:[%s165 + $0xa0] sm:$0xff]
      %v193 = vld [vmem:[%s165 + $0xa8] sm:$0xff]
      %v194 = vld [vmem:[%s165 + $0xb0] sm:$0xff]
      %v195 = vld [vmem:[%s165 + $0xb8] sm:$0xff]
      %v196 = vld [vmem:[%s165 + $0xc0] sm:$0xf]
      %v197 = vld [vmem:[%s165 + $0xc8] sm:$0xf]
      %v198 = vld [vmem:[%s165 + $0xd0] sm:$0xf]
      %v199 = vld [vmem:[%s165 + $0xd8] sm:$0xf]
      %v200 = vld [vmem:[%s165 + $0xe0] sm:$0xf]
      %v201 = vld [vmem:[%s165 + $0xe8] sm:$0xf]
      %vm202 = vcmask 293888
      %v204 = vsel %vm202, %v171, 0
      %vm206 = vcmask 1043456
      %v208 = vsel %vm206, %v196, 0
      %v211 = vsel %vm206, %v197, 0
      %v214 = vsel %vm206, %v198, 0
      %v217 = vsel %vm206, %v199, 0
      %v220 = vsel %vm206, %v200, 0
      %v223 = vsel %vm206, %v201, 0
      %225 = vmatprep.subr.mxu0 0.0
      %226 = vmatpush1.msra.mxu0 0.0
      %227 = vmatprep.subr.mxu0 0.0
      %228 = vmatpush1.msra.mxu0 0.0
      %229 = vmatprep.subr.mxu0 0.0
      %230 = vmatpush1.msra.mxu0 0.0
      %231 = vmatprep.subr.mxu0 0.0
      %232 = vmatpush1.msra.mxu0 0.0
      %233 = vmatprep.subr.mxu0 0.0
      %234 = vmatpush1.msra.mxu0 0.0
      %235 = vmatprep.subr.mxu0 0.0
      %236 = vmatpush1.msra.mxu0 0.0
      %237 = vmatprep.subr.mxu0 0.0
      %238 = vmatpush1.msra.mxu0 0.0
      %239 = vmatprep.subr.mxu0 0.0
      %240 = vmatpush1.msra.mxu0 0.0
      %241 = vmatprep.subr.mxu0 0.0
      %242 = vmatpush1.msra.mxu0 0.0
      %243 = vmatprep.subr.mxu0 0.0
      %244 = vmatpush1.msra.mxu0 0.0
      %245 = vmatprep.subr.mxu0 0.0
      %246 = vmatpush1.msra.mxu0 0.0
      %247 = vmatprep.subr.mxu0 %v211
      %248 = vmatpush1.msra.mxu0 %v208
      %249 = vmatprep.subr.mxu0 %v191
      %250 = vmatpush1.msra.mxu0 %v190
      %251 = vmatprep.subr.mxu0 %v185
      %252 = vmatpush1.msra.mxu0 %v184
      %253 = vmatprep.subr.mxu0 %v179
      %254 = vmatpush1.msra.mxu0 %v178
      %255 = vmatprep.subr.mxu0 %v173
      %256 = vmatpush1.msra.mxu0 %v172
      %257 = vmatprep.subr.mxu0 0.0
      %258 = vmatpush2.msra.mxu0 0.0
      %259 = vmatprep.subr.mxu0 0.0
      %260 = vmatpush2.msra.mxu0 0.0
      %261 = vmatprep.subr.mxu0 0.0
      %262 = vmatpush2.msra.mxu0 0.0
      %263 = vmatprep.subr.mxu0 0.0
      %264 = vmatpush2.msra.mxu0 0.0
      %265 = vmatprep.subr.mxu0 0.0
      %266 = vmatpush2.msra.mxu0 0.0
      %267 = vmatprep.subr.mxu0 0.0
      %268 = vmatpush2.msra.mxu0 0.0
      %269 = vmatprep.subr.mxu0 0.0
      %270 = vmatpush2.msra.mxu0 0.0
      %271 = vmatprep.subr.mxu0 0.0
      %272 = vmatpush2.msra.mxu0 0.0
      %273 = vmatprep.subr.mxu0 0.0
      %274 = vmatpush2.msra.mxu0 0.0
      %275 = vmatprep.subr.mxu0 0.0
      %276 = vmatpush2.msra.mxu0 0.0
      %277 = vmatprep.subr.mxu0 0.0
      %278 = vmatpush2.msra.mxu0 0.0
      %279 = vmatprep.subr.mxu0 0.0
      %280 = vmatpush2.msra.mxu0 0.0
      %281 = vmatprep.subr.mxu0 0.0
      %282 = vmatpush2.msra.mxu0 0.0
      %283 = vmatprep.subr.mxu0 0.0
      %284 = vmatpush2.msra.mxu0 0.0
      %285 = vmatprep.subr.mxu0 0.0
      %286 = vmatpush2.msra.mxu0 0.0
      %287 = vmatprep.subr.mxu0 0.0
      %288 = vmatpush2.msra.mxu0 0.0
      %289 = vmatprep.mubr.f32.mxu0 0.0
      %290 = vmatmul.mubr.f32.gmra.mxu0 %v204
      %v291 = vpop.f32.mrf.mxu0
      %v292 = vadd.f32 0.0, %v291
      %v293 = vpop.f32.mrf.mxu0
      %v294 = vadd.f32 0.0, %v293
      %295 = vdwg.mxu0
      %296 = vmatprep.subr.mxu0 0.0
      %297 = vmatpush1.msra.mxu0 0.0
      %298 = vmatprep.subr.mxu0 0.0
      %299 = vmatpush1.msra.mxu0 0.0
      %300 = vmatprep.subr.mxu0 0.0
      %301 = vmatpush1.msra.mxu0 0.0
      %302 = vmatprep.subr.mxu0 0.0
      %303 = vmatpush1.msra.mxu0 0.0
      %304 = vmatprep.subr.mxu0 0.0
      %305 = vmatpush1.msra.mxu0 0.0
      %306 = vmatprep.subr.mxu0 0.0
      %307 = vmatpush1.msra.mxu0 0.0
      %308 = vmatprep.subr.mxu0 0.0
      %309 = vmatpush1.msra.mxu0 0.0
      %310 = vmatprep.subr.mxu0 0.0
      %311 = vmatpush1.msra.mxu0 0.0
      %312 = vmatprep.subr.mxu0 0.0
      %313 = vmatpush1.msra.mxu0 0.0
      %314 = vmatprep.subr.mxu0 0.0
      %315 = vmatpush1.msra.mxu0 0.0
      %316 = vmatprep.subr.mxu0 0.0
      %317 = vmatpush1.msra.mxu0 0.0
      %318 = vmatprep.subr.mxu0 %v217
      %319 = vmatpush1.msra.mxu0 %v214
      %320 = vmatprep.subr.mxu0 %v193
      %321 = vmatpush1.msra.mxu0 %v192
      %322 = vmatprep.subr.mxu0 %v187
      %323 = vmatpush1.msra.mxu0 %v186
      %324 = vmatprep.subr.mxu0 %v181
      %325 = vmatpush1.msra.mxu0 %v180
      %326 = vmatprep.subr.mxu0 %v175
      %327 = vmatpush1.msra.mxu0 %v174
      %328 = vmatprep.subr.mxu0 0.0
      %329 = vmatpush2.msra.mxu0 0.0
      %330 = vmatprep.subr.mxu0 0.0
      %331 = vmatpush2.msra.mxu0 0.0
      %332 = vmatprep.subr.mxu0 0.0
      %333 = vmatpush2.msra.mxu0 0.0
      %334 = vmatprep.subr.mxu0 0.0
      %335 = vmatpush2.msra.mxu0 0.0
      %336 = vmatprep.subr.mxu0 0.0
      %337 = vmatpush2.msra.mxu0 0.0
      %338 = vmatprep.subr.mxu0 0.0
      %339 = vmatpush2.msra.mxu0 0.0
      %340 = vmatprep.subr.mxu0 0.0
      %341 = vmatpush2.msra.mxu0 0.0
      %342 = vmatprep.subr.mxu0 0.0
      %343 = vmatpush2.msra.mxu0 0.0
      %344 = vmatprep.subr.mxu0 0.0
      %345 = vmatpush2.msra.mxu0 0.0
      %346 = vmatprep.subr.mxu0 0.0
      %347 = vmatpush2.msra.mxu0 0.0
      %348 = vmatprep.subr.mxu0 0.0
      %349 = vmatpush2.msra.mxu0 0.0
      %350 = vmatprep.subr.mxu0 0.0
      %351 = vmatpush2.msra.mxu0 0.0
      %352 = vmatprep.subr.mxu0 0.0
      %353 = vmatpush2.msra.mxu0 0.0
      %354 = vmatprep.subr.mxu0 0.0
      %355 = vmatpush2.msra.mxu0 0.0
      %356 = vmatprep.subr.mxu0 0.0
      %357 = vmatpush2.msra.mxu0 0.0
      %358 = vmatprep.subr.mxu0 0.0
      %359 = vmatpush2.msra.mxu0 0.0
      %360 = vmatprep.mubr.f32.mxu0 0.0
      %361 = vmatmul.mubr.f32.gmra.mxu0 %v204
      %v362 = vpop.f32.mrf.mxu0
      %v363 = vadd.f32 0.0, %v362
      %v364 = vpop.f32.mrf.mxu0
      %v365 = vadd.f32 0.0, %v364
      %366 = vdwg.mxu0
      %367 = vmatprep.subr.mxu0 0.0
      %368 = vmatpush1.msra.mxu0 0.0
      %369 = vmatprep.subr.mxu0 0.0
      %370 = vmatpush1.msra.mxu0 0.0
      %371 = vmatprep.subr.mxu0 0.0
      %372 = vmatpush1.msra.mxu0 0.0
      %373 = vmatprep.subr.mxu0 0.0
      %374 = vmatpush1.msra.mxu0 0.0
      %375 = vmatprep.subr.mxu0 0.0
      %376 = vmatpush1.msra.mxu0 0.0
      %377 = vmatprep.subr.mxu0 0.0
      %378 = vmatpush1.msra.mxu0 0.0
      %379 = vmatprep.subr.mxu0 0.0
      %380 = vmatpush1.msra.mxu0 0.0
      %381 = vmatprep.subr.mxu0 0.0
      %382 = vmatpush1.msra.mxu0 0.0
      %383 = vmatprep.subr.mxu0 0.0
      %384 = vmatpush1.msra.mxu0 0.0
      %385 = vmatprep.subr.mxu0 0.0
      %386 = vmatpush1.msra.mxu0 0.0
      %387 = vmatprep.subr.mxu0 0.0
      %388 = vmatpush1.msra.mxu0 0.0
      %389 = vmatprep.subr.mxu0 %v223
      %390 = vmatpush1.msra.mxu0 %v220
      %391 = vmatprep.subr.mxu0 %v195
      %392 = vmatpush1.msra.mxu0 %v194
      %393 = vmatprep.subr.mxu0 %v189
      %394 = vmatpush1.msra.mxu0 %v188
      %395 = vmatprep.subr.mxu0 %v183
      %396 = vmatpush1.msra.mxu0 %v182
      %397 = vmatprep.subr.mxu0 %v177
      %398 = vmatpush1.msra.mxu0 %v176
      %399 = vmatprep.subr.mxu0 0.0
      %400 = vmatpush2.msra.mxu0 0.0
      %401 = vmatprep.subr.mxu0 0.0
      %402 = vmatpush2.msra.mxu0 0.0
      %403 = vmatprep.subr.mxu0 0.0
      %404 = vmatpush2.msra.mxu0 0.0
      %405 = vmatprep.subr.mxu0 0.0
      %406 = vmatpush2.msra.mxu0 0.0
      %407 = vmatprep.subr.mxu0 0.0
      %408 = vmatpush2.msra.mxu0 0.0
      %409 = vmatprep.subr.mxu0 0.0
      %410 = vmatpush2.msra.mxu0 0.0
      %411 = vmatprep.subr.mxu0 0.0
      %412 = vmatpush2.msra.mxu0 0.0
      %413 = vmatprep.subr.mxu0 0.0
      %414 = vmatpush2.msra.mxu0 0.0
      %415 = vmatprep.subr.mxu0 0.0
      %416 = vmatpush2.msra.mxu0 0.0
      %417 = vmatprep.subr.mxu0 0.0
      %418 = vmatpush2.msra.mxu0 0.0
      %419 = vmatprep.subr.mxu0 0.0
      %420 = vmatpush2.msra.mxu0 0.0
      %421 = vmatprep.subr.mxu0 0.0
      %422 = vmatpush2.msra.mxu0 0.0
      %423 = vmatprep.subr.mxu0 0.0
      %424 = vmatpush2.msra.mxu0 0.0
      %425 = vmatprep.subr.mxu0 0.0
      %426 = vmatpush2.msra.mxu0 0.0
      %427 = vmatprep.subr.mxu0 0.0
      %428 = vmatpush2.msra.mxu0 0.0
      %429 = vmatprep.subr.mxu0 0.0
      %430 = vmatpush2.msra.mxu0 0.0
      %431 = vmatprep.mubr.f32.mxu0 0.0
      %432 = vmatmul.mubr.f32.gmra.mxu0 %v204
      %v433 = vpop.f32.mrf.mxu0
      %v434 = vadd.f32 0.0, %v433
      %v435 = vpop.f32.mrf.mxu0
      %v436 = vadd.f32 0.0, %v435
      %437 = vdwg.mxu0
      %v438 = vmax.f32 %v292, 0.0
      %v439 = vmax.f32 %v294, 0.0
      %v440 = vmax.f32 %v363, 0.0
      %v441 = vmax.f32 %v365, 0.0
      %v442 = vmax.f32 %v434, 0.0
      %v443 = vmax.f32 %v436, 0.0
      %444 = vst [vmem:[#allocation2] sm:$0xff] %v438
      %445 = vst [vmem:[#allocation2 + $0x8] sm:$0xff] %v439
      %446 = vst [vmem:[#allocation2 + $0x10] sm:$0xff] %v440
      %447 = vst [vmem:[#allocation2 + $0x18] sm:$0xff] %v441
      %448 = vst [vmem:[#allocation2 + $0x20] sm:$0xff] %v442
      %vm449 = vcmask 375808
      %450 = vst.msk [vmem:[#allocation2 + $0x28] sm:$0xff] %vm449, %v443
      %v451 = vld [vmem:[#allocation2] sm:$0xff]
      %v452 = vld [vmem:[#allocation2 + $0x8] sm:$0xff]
      %v453 = vld [vmem:[#allocation2 + $0x10] sm:$0xff]
      %v454 = vld [vmem:[#allocation2 + $0x18] sm:$0xff]
      %455 = vst [vmem:[#allocation3] sm:$0xff] %v451
      %456 = vst [vmem:[#allocation3 + $0x8] sm:$0xff] %v452
      %457 = vst [vmem:[#allocation3 + $0x10] sm:$0xff] %v453
      %vm458 = vcmask 261120
      %459 = vst.msk [vmem:[#allocation3 + $0x18] sm:$0xff] %vm458, %v454
      %v460 = vld [vmem:[#allocation2] sm:$0xff]
      %v461 = vld [vmem:[#allocation2 + $0x8] sm:$0xff]
      %v462 = vld [vmem:[#allocation2 + $0x10] sm:$0xff]
      %v463 = vld [vmem:[#allocation2 + $0x18] sm:$0xff]
      %468 = vrot.lane.b32.xlu0 %v460, 123
      %v469 = vpop.permute.xlu0 %468
      %470 = vrot.lane.b32.xlu0 %v461, 123
      %v471 = vpop.permute.xlu0 %470
      %472 = vrot.lane.b32.xlu0 %v462, 123
      %v473 = vpop.permute.xlu0 %472
      %474 = vrot.lane.b32.xlu0 %v463, 123
      %v475 = vpop.permute.xlu0 %474
      %vm476 = vcmask 1006592
      %v477 = vsel %vm476, %v469, %v471
      %v478 = vsel %vm476, %v471, %v473
      %v479 = vsel %vm476, %v473, %v475
      %484 = vst [vmem:[#allocation3 + $0x20] sm:$0xff] %v477
      %485 = vst [vmem:[#allocation3 + $0x28] sm:$0xff] %v478
      %486 = vst [vmem:[#allocation3 + $0x30] sm:$0xff] %v479
      %487 = vst.msk [vmem:[#allocation3 + $0x38] sm:$0xff] %vm458, %v475
      %v488 = vld [vmem:[#allocation2] sm:$0xff]
      %v489 = vld [vmem:[#allocation2 + $0x8] sm:$0xff]
      %v490 = vld [vmem:[#allocation2 + $0x10] sm:$0xff]
      %v491 = vld [vmem:[#allocation2 + $0x18] sm:$0xff]
      %496 = vrot.lane.b32.xlu0 %v488, 118
      %v497 = vpop.permute.xlu0 %496
      %498 = vrot.lane.b32.xlu0 %v489, 118
      %v499 = vpop.permute.xlu0 %498
      %500 = vrot.lane.b32.xlu0 %v490, 118
      %v501 = vpop.permute.xlu0 %500
      %502 = vrot.lane.b32.xlu0 %v491, 118
      %v503 = vpop.permute.xlu0 %502
      %vm504 = vcmask 965632
      %v505 = vsel %vm504, %v497, %v499
      %v506 = vsel %vm504, %v499, %v501
      %v507 = vsel %vm504, %v501, %v503
      %512 = vst [vmem:[#allocation3 + $0x40] sm:$0xff] %v505
      %513 = vst [vmem:[#allocation3 + $0x48] sm:$0xff] %v506
      %514 = vst [vmem:[#allocation3 + $0x50] sm:$0xff] %v507
      %515 = vst.msk [vmem:[#allocation3 + $0x58] sm:$0xff] %vm458, %v503
      %v516 = vld [vmem:[#allocation2 + $0x8] sm:$0xff]
      %v517 = vld [vmem:[#allocation2 + $0x10] sm:$0xff]
      %v518 = vld [vmem:[#allocation2 + $0x18] sm:$0xff]
      %v519 = vld [vmem:[#allocation2 + $0x20] sm:$0xff]
      %524 = vrot.lane.b32.xlu0 %v516, 126
      %v525 = vpop.permute.xlu0 %524
      %526 = vrot.lane.b32.xlu0 %v517, 126
      %v527 = vpop.permute.xlu0 %526
      %528 = vrot.lane.b32.xlu0 %v518, 126
      %v529 = vpop.permute.xlu0 %528
      %530 = vrot.lane.b32.xlu0 %v519, 126
      %v531 = vpop.permute.xlu0 %530
      %vm532 = vcmask 1031168
      %v533 = vsel %vm532, %v525, %v527
      %v534 = vsel %vm532, %v527, %v529
      %v535 = vsel %vm532, %v529, %v531
      %540 = vst [vmem:[#allocation3 + $0x60] sm:$0xff] %v533
      %541 = vst [vmem:[#allocation3 + $0x68] sm:$0xff] %v534
      %542 = vst [vmem:[#allocation3 + $0x70] sm:$0xff] %v535
      %543 = vst.msk [vmem:[#allocation3 + $0x78] sm:$0xff] %vm458, %v531
      %v544 = vld [vmem:[#allocation2 + $0x8] sm:$0xff]
      %v545 = vld [vmem:[#allocation2 + $0x10] sm:$0xff]
      %v546 = vld [vmem:[#allocation2 + $0x18] sm:$0xff]
      %v547 = vld [vmem:[#allocation2 + $0x20] sm:$0xff]
      %552 = vrot.lane.b32.xlu0 %v544, 121
      %v553 = vpop.permute.xlu0 %552
      %554 = vrot.lane.b32.xlu0 %v545, 121
      %v555 = vpop.permute.xlu0 %554
      %556 = vrot.lane.b32.xlu0 %v546, 121
      %v557 = vpop.permute.xlu0 %556
      %558 = vrot.lane.b32.xlu0 %v547, 121
      %v559 = vpop.permute.xlu0 %558
      %vm560 = vcmask 990208
      %v561 = vsel %vm560, %v553, %v555
      %v562 = vsel %vm560, %v555, %v557
      %v563 = vsel %vm560, %v557, %v559
      %568 = vst [vmem:[#allocation3 + $0x80] sm:$0xff] %v561
      %569 = vst [vmem:[#allocation3 + $0x88] sm:$0xff] %v562
      %570 = vst [vmem:[#allocation3 + $0x90] sm:$0xff] %v563
      %571 = vst.msk [vmem:[#allocation3 + $0x98] sm:$0xff] %vm458, %v559
      %v572 = vld [vmem:[#allocation2 + $0x8] sm:$0xff]
      %v573 = vld [vmem:[#allocation2 + $0x10] sm:$0xff]
      %v574 = vld [vmem:[#allocation2 + $0x18] sm:$0xff]
      %v575 = vld [vmem:[#allocation2 + $0x20] sm:$0xff]
      %580 = vrot.lane.b32.xlu0 %v572, 116
      %v581 = vpop.permute.xlu0 %580
      %582 = vrot.lane.b32.xlu0 %v573, 116
      %v583 = vpop.permute.xlu0 %582
      %584 = vrot.lane.b32.xlu0 %v574, 116
      %v585 = vpop.permute.xlu0 %584
      %586 = vrot.lane.b32.xlu0 %v575, 116
      %v587 = vpop.permute.xlu0 %586
      %vm588 = vcmask 949248
      %v589 = vsel %vm588, %v581, %v583
      %v590 = vsel %vm588, %v583, %v585
      %v591 = vsel %vm588, %v585, %v587
      %596 = vst [vmem:[#allocation3 + $0xa0] sm:$0xff] %v589
      %597 = vst [vmem:[#allocation3 + $0xa8] sm:$0xff] %v590
      %598 = vst [vmem:[#allocation3 + $0xb0] sm:$0xff] %v591
      %599 = vst.msk [vmem:[#allocation3 + $0xb8] sm:$0xff] %vm458, %v587
      %v600 = vld [vmem:[#allocation2 + $0x10] sm:$0xff]
      %v601 = vld [vmem:[#allocation2 + $0x18] sm:$0xff]
      %v602 = vld [vmem:[#allocation2 + $0x20] sm:$0xff]
      %v603 = vld [vmem:[#allocation2 + $0x28] sm:$0xff]
      %608 = vrot.lane.b32.xlu0 %v600, 124
      %v609 = vpop.permute.xlu0 %608
      %610 = vrot.lane.b32.xlu0 %v601, 124
      %v611 = vpop.permute.xlu0 %610
      %612 = vrot.lane.b32.xlu0 %v602, 124
      %v613 = vpop.permute.xlu0 %612
      %614 = vrot.lane.b32.xlu0 %v603, 124
      %v615 = vpop.permute.xlu0 %614
      %vm616 = vcmask 1014784
      %v617 = vsel %vm616, %v609, %v611
      %v618 = vsel %vm616, %v611, %v613
      %v619 = vsel %vm616, %v613, %v615
      %624 = vst [vmem:[#allocation3 + $0xc0] sm:$0xff] %v617
      %625 = vst [vmem:[#allocation3 + $0xc8] sm:$0xff] %v618
      %626 = vst [vmem:[#allocation3 + $0xd0] sm:$0xff] %v619
      %627 = vst.msk [vmem:[#allocation3 + $0xd8] sm:$0xff] %vm458, %v615
      %v628 = vld [vmem:[#allocation2 + $0x10] sm:$0xff]
      %v629 = vld [vmem:[#allocation2 + $0x18] sm:$0xff]
      %v630 = vld [vmem:[#allocation2 + $0x20] sm:$0xff]
      %v631 = vld [vmem:[#allocation2 + $0x28] sm:$0xff]
      %636 = vrot.lane.b32.xlu0 %v628, 119
      %v637 = vpop.permute.xlu0 %636
      %638 = vrot.lane.b32.xlu0 %v629, 119
      %v639 = vpop.permute.xlu0 %638
      %640 = vrot.lane.b32.xlu0 %v630, 119
      %v641 = vpop.permute.xlu0 %640
      %642 = vrot.lane.b32.xlu0 %v631, 119
      %v643 = vpop.permute.xlu0 %642
      %vm644 = vcmask 973824
      %v645 = vsel %vm644, %v637, %v639
      %v646 = vsel %vm644, %v639, %v641
      %v647 = vsel %vm644, %v641, %v643
      %652 = vst [vmem:[#allocation3 + $0xe0] sm:$0xff] %v645
      %653 = vst [vmem:[#allocation3 + $0xe8] sm:$0xff] %v646
      %654 = vst [vmem:[#allocation3 + $0xf0] sm:$0xff] %v647
      %655 = vst.msk [vmem:[#allocation3 + $0xf8] sm:$0xff] %vm458, %v643
      %v656 = vld [vmem:[#allocation2 + $0x10] sm:$0xff]
      %v657 = vld [vmem:[#allocation2 + $0x18] sm:$0xff]
      %v658 = vld [vmem:[#allocation2 + $0x20] sm:$0xff]
      %v659 = vld [vmem:[#allocation2 + $0x28] sm:$0xff]
      %664 = vrot.lane.b32.xlu0 %v656, 114
      %v665 = vpop.permute.xlu0 %664
      %666 = vrot.lane.b32.xlu0 %v657, 114
      %v667 = vpop.permute.xlu0 %666
      %668 = vrot.lane.b32.xlu0 %v658, 114
      %v669 = vpop.permute.xlu0 %668
      %670 = vrot.lane.b32.xlu0 %v659, 114
      %v671 = vpop.permute.xlu0 %670
      %vm672 = vcmask 932864
      %v673 = vsel %vm672, %v665, %v667
      %v674 = vsel %vm672, %v667, %v669
      %v675 = vsel %vm672, %v669, %v671
      %680 = vst [vmem:[#allocation3 + $0x100] sm:$0xff] %v673
      %681 = vst [vmem:[#allocation3 + $0x108] sm:$0xff] %v674
      %682 = vst [vmem:[#allocation3 + $0x110] sm:$0xff] %v675
      %683 = vst.msk [vmem:[#allocation3 + $0x118] sm:$0xff] %vm458, %v671
      %v684 = vld [vmem:[%s2] sm:$0xf]
      %v685 = vld [vmem:[#allocation3] sm:$0xff]
      %v686 = vld [vmem:[#allocation3 + $0x8] sm:$0xff]
      %v687 = vld [vmem:[#allocation3 + $0x10] sm:$0xff]
      %v688 = vld [vmem:[#allocation3 + $0x18] sm:$0xff]
      %v689 = vld [vmem:[#allocation3 + $0x20] sm:$0xff]
      %v690 = vld [vmem:[#allocation3 + $0x28] sm:$0xff]
      %v691 = vld [vmem:[#allocation3 + $0x30] sm:$0xff]
      %v692 = vld [vmem:[#allocation3 + $0x38] sm:$0xff]
      %v693 = vld [vmem:[#allocation3 + $0x40] sm:$0xff]
      %v694 = vld [vmem:[#allocation3 + $0x48] sm:$0xff]
      %v695 = vld [vmem:[#allocation3 + $0x50] sm:$0xff]
      %v696 = vld [vmem:[#allocation3 + $0x58] sm:$0xff]
      %v697 = vld [vmem:[#allocation3 + $0x60] sm:$0xff]
      %v698 = vld [vmem:[#allocation3 + $0x68] sm:$0xff]
      %v699 = vld [vmem:[#allocation3 + $0x70] sm:$0xff]
      %v700 = vld [vmem:[#allocation3 + $0x78] sm:$0xff]
      %v701 = vld [vmem:[#allocation3 + $0x80] sm:$0xff]
      %v702 = vld [vmem:[#allocation3 + $0x88] sm:$0xff]
      %v703 = vld [vmem:[#allocation3 + $0x90] sm:$0xff]
      %v704 = vld [vmem:[#allocation3 + $0x98] sm:$0xff]
      %v705 = vld [vmem:[#allocation3 + $0xa0] sm:$0xff]
      %v706 = vld [vmem:[#allocation3 + $0xa8] sm:$0xff]
      %v707 = vld [vmem:[#allocation3 + $0xb0] sm:$0xff]
      %v708 = vld [vmem:[#allocation3 + $0xb8] sm:$0xff]
      %v709 = vld [vmem:[#allocation3 + $0xc0] sm:$0xff]
      %v710 = vld [vmem:[#allocation3 + $0xc8] sm:$0xff]
      %v711 = vld [vmem:[#allocation3 + $0xd0] sm:$0xff]
      %v712 = vld [vmem:[#allocation3 + $0xd8] sm:$0xff]
      %v713 = vld [vmem:[#allocation3 + $0xe0] sm:$0xff]
      %v714 = vld [vmem:[#allocation3 + $0xe8] sm:$0xff]
      %v715 = vld [vmem:[#allocation3 + $0xf0] sm:$0xff]
      %v716 = vld [vmem:[#allocation3 + $0xf8] sm:$0xff]
      %v717 = vld [vmem:[#allocation3 + $0x100] sm:$0xff]
      %v718 = vld [vmem:[#allocation3 + $0x108] sm:$0xff]
      %v719 = vld [vmem:[#allocation3 + $0x110] sm:$0xff]
      %v720 = vld [vmem:[#allocation3 + $0x118] sm:$0xff]
      %vm721 = vcmask 588800
      %v723 = vsel %vm721, %v684, 0
      %725 = vmatprep.subr.mxu0 0.0
      %726 = vmatpush1.msra.mxu0 0.0
      %727 = vmatprep.subr.mxu0 0.0
      %728 = vmatpush1.msra.mxu0 0.0
      %729 = vmatprep.subr.mxu0 0.0
      %730 = vmatpush1.msra.mxu0 0.0
      %731 = vmatprep.subr.mxu0 0.0
      %732 = vmatpush1.msra.mxu0 0.0
      %733 = vmatprep.subr.mxu0 0.0
      %734 = vmatpush1.msra.mxu0 0.0
      %735 = vmatprep.subr.mxu0 0.0
      %736 = vmatpush1.msra.mxu0 0.0
      %737 = vmatprep.subr.mxu0 0.0
      %738 = vmatpush1.msra.mxu0 0.0
      %739 = vmatprep.subr.mxu0 %v718
      %740 = vmatpush1.msra.mxu0 %v717
      %741 = vmatprep.subr.mxu0 %v714
      %742 = vmatpush1.msra.mxu0 %v713
      %743 = vmatprep.subr.mxu0 %v710
      %744 = vmatpush1.msra.mxu0 %v709
      %745 = vmatprep.subr.mxu0 %v706
      %746 = vmatpush1.msra.mxu0 %v705
      %747 = vmatprep.subr.mxu0 %v702
      %748 = vmatpush1.msra.mxu0 %v701
      %749 = vmatprep.subr.mxu0 %v698
      %750 = vmatpush1.msra.mxu0 %v697
      %751 = vmatprep.subr.mxu0 %v694
      %752 = vmatpush1.msra.mxu0 %v693
      %753 = vmatprep.subr.mxu0 %v690
      %754 = vmatpush1.msra.mxu0 %v689
      %755 = vmatprep.subr.mxu0 %v686
      %756 = vmatpush1.msra.mxu0 %v685
      %757 = vmatprep.subr.mxu0 0.0
      %758 = vmatpush2.msra.mxu0 0.0
      %759 = vmatprep.subr.mxu0 0.0
      %760 = vmatpush2.msra.mxu0 0.0
      %761 = vmatprep.subr.mxu0 0.0
      %762 = vmatpush2.msra.mxu0 0.0
      %763 = vmatprep.subr.mxu0 0.0
      %764 = vmatpush2.msra.mxu0 0.0
      %765 = vmatprep.subr.mxu0 0.0
      %766 = vmatpush2.msra.mxu0 0.0
      %767 = vmatprep.subr.mxu0 0.0
      %768 = vmatpush2.msra.mxu0 0.0
      %769 = vmatprep.subr.mxu0 0.0
      %770 = vmatpush2.msra.mxu0 0.0
      %771 = vmatprep.subr.mxu0 0.0
      %772 = vmatpush2.msra.mxu0 0.0
      %773 = vmatprep.subr.mxu0 0.0
      %774 = vmatpush2.msra.mxu0 0.0
      %775 = vmatprep.subr.mxu0 0.0
      %776 = vmatpush2.msra.mxu0 0.0
      %777 = vmatprep.subr.mxu0 0.0
      %778 = vmatpush2.msra.mxu0 0.0
      %779 = vmatprep.subr.mxu0 0.0
      %780 = vmatpush2.msra.mxu0 0.0
      %781 = vmatprep.subr.mxu0 0.0
      %782 = vmatpush2.msra.mxu0 0.0
      %783 = vmatprep.subr.mxu0 0.0
      %784 = vmatpush2.msra.mxu0 0.0
      %785 = vmatprep.subr.mxu0 0.0
      %786 = vmatpush2.msra.mxu0 0.0
      %787 = vmatprep.subr.mxu0 0.0
      %788 = vmatpush2.msra.mxu0 0.0
      %789 = vmatprep.mubr.f32.mxu0 0.0
      %790 = vmatmul.mubr.f32.gmra.mxu0 %v723
      %v791 = vpop.f32.mrf.mxu0
      %v792 = vadd.f32 0.0, %v791
      %v793 = vpop.f32.mrf.mxu0
      %v794 = vadd.f32 0.0, %v793
      %795 = vdwg.mxu0
      %796 = vmatprep.subr.mxu0 0.0
      %797 = vmatpush1.msra.mxu0 0.0
      %798 = vmatprep.subr.mxu0 0.0
      %799 = vmatpush1.msra.mxu0 0.0
      %800 = vmatprep.subr.mxu0 0.0
      %801 = vmatpush1.msra.mxu0 0.0
      %802 = vmatprep.subr.mxu0 0.0
      %803 = vmatpush1.msra.mxu0 0.0
      %804 = vmatprep.subr.mxu0 0.0
      %805 = vmatpush1.msra.mxu0 0.0
      %806 = vmatprep.subr.mxu0 0.0
      %807 = vmatpush1.msra.mxu0 0.0
      %808 = vmatprep.subr.mxu0 0.0
      %809 = vmatpush1.msra.mxu0 0.0
      %810 = vmatprep.subr.mxu0 %v720
      %811 = vmatpush1.msra.mxu0 %v719
      %812 = vmatprep.subr.mxu0 %v716
      %813 = vmatpush1.msra.mxu0 %v715
      %814 = vmatprep.subr.mxu0 %v712
      %815 = vmatpush1.msra.mxu0 %v711
      %816 = vmatprep.subr.mxu0 %v708
      %817 = vmatpush1.msra.mxu0 %v707
      %818 = vmatprep.subr.mxu0 %v704
      %819 = vmatpush1.msra.mxu0 %v703
      %820 = vmatprep.subr.mxu0 %v700
      %821 = vmatpush1.msra.mxu0 %v699
      %822 = vmatprep.subr.mxu0 %v696
      %823 = vmatpush1.msra.mxu0 %v695
      %824 = vmatprep.subr.mxu0 %v692
      %825 = vmatpush1.msra.mxu0 %v691
      %826 = vmatprep.subr.mxu0 %v688
      %827 = vmatpush1.msra.mxu0 %v687
      %828 = vmatprep.subr.mxu0 0.0
      %829 = vmatpush2.msra.mxu0 0.0
      %830 = vmatprep.subr.mxu0 0.0
      %831 = vmatpush2.msra.mxu0 0.0
      %832 = vmatprep.subr.mxu0 0.0
      %833 = vmatpush2.msra.mxu0 0.0
      %834 = vmatprep.subr.mxu0 0.0
      %835 = vmatpush2.msra.mxu0 0.0
      %836 = vmatprep.subr.mxu0 0.0
      %837 = vmatpush2.msra.mxu0 0.0
      %838 = vmatprep.subr.mxu0 0.0
      %839 = vmatpush2.msra.mxu0 0.0
      %840 = vmatprep.subr.mxu0 0.0
      %841 = vmatpush2.msra.mxu0 0.0
      %842 = vmatprep.subr.mxu0 0.0
      %843 = vmatpush2.msra.mxu0 0.0
      %844 = vmatprep.subr.mxu0 0.0
      %845 = vmatpush2.msra.mxu0 0.0
      %846 = vmatprep.subr.mxu0 0.0
      %847 = vmatpush2.msra.mxu0 0.0
      %848 = vmatprep.subr.mxu0 0.0
      %849 = vmatpush2.msra.mxu0 0.0
      %850 = vmatprep.subr.mxu0 0.0
      %851 = vmatpush2.msra.mxu0 0.0
      %852 = vmatprep.subr.mxu0 0.0
      %853 = vmatpush2.msra.mxu0 0.0
      %854 = vmatprep.subr.mxu0 0.0
      %855 = vmatpush2.msra.mxu0 0.0
      %856 = vmatprep.subr.mxu0 0.0
      %857 = vmatpush2.msra.mxu0 0.0
      %858 = vmatprep.subr.mxu0 0.0
      %859 = vmatpush2.msra.mxu0 0.0
      %860 = vmatprep.mubr.f32.mxu0 0.0
      %861 = vmatmul.mubr.f32.gmra.mxu0 %v723
      %v862 = vpop.f32.mrf.mxu0
      %v863 = vadd.f32 0.0, %v862
      %v864 = vpop.f32.mrf.mxu0
      %v865 = vadd.f32 0.0, %v864
      %866 = vdwg.mxu0
      %v867 = vmax.f32 %v792, 0.0
      %v868 = vmax.f32 %v794, 0.0
      %v869 = vmax.f32 %v863, 0.0
      %v870 = vmax.f32 %v865, 0.0
      %v875 = vcombine.low %v867, %v868
      %v876 = vcombine.low %v869, %v870
      %879 = vst [vmem:[%s170] sm:$0xff] %v875
      %vm880 = vcmask 261124
      %vm881 = vmor %vm880, %vm206
      %882 = vst.msk [vmem:[%s170 + $0x8] sm:$0xff] %vm881, %v876
      %p883 = scmp.lt.s32.totalorder %s14, 1
      %s884 = scalar_select %p883, %s14, 1
      %s885 = smul.addr %s884, 4
      %s886 = smul.addr %s885, 4
      %s887 = scalar_lea.vmem %s3, %s886
      // Predicated region
      $region33: #{fpn_head_forward.1} parent=31 // pred_check
        %p888 = pneg %p100
      $region34: #{fpn_head_forward.1} parent=31 // pred_check_branch
        %890 = sbr.rel (%p888) target = $region36
      $region35: #{fpn_head_forward.1} parent=31 // pred_region
        _
      $region36: #{fpn_head_forward.1} parent=31 // pred_fallthru
        _
    $region32: #{fpn_head_forward.1} parent=5 // pred_fallthru
      _
    %p891 = scmp.le.s32.totalorder 2, %s9
    // Predicated region
    $region37: #{fpn_head_forward.1} parent=5 // pred_check
      %p892 = pneg %p891
    $region38: #{fpn_head_forward.1} parent=5 // pred_check_branch
      %894 = sbr.rel (%p892) target = $region40
    $region39: #{fpn_head_forward.1} parent=5 // pred_region
      %s895 = ssub.s32 %s9, 2
      // Predicated region
      $region41: #{fpn_head_forward.1} parent=39 // pred_check
        %p896 = pneg %p106
      $region42: #{fpn_head_forward.1} parent=39 // pred_check_branch
        %898 = sbr.rel (%p896) target = $region44
      $region43: #{fpn_head_forward.1} parent=39 // pred_region
        %p899 = scmp.lt.s32.totalorder %s15, 1
        %s900 = scalar_select %p899, %s15, 1
        %s901 = smul.addr %s900, 4
        %s902 = smul.addr %s901, 4
        %s903 = scalar_lea.vmem %s3, %s902
      $region44: #{fpn_head_forward.1} parent=39 // pred_fallthru
        _
    $region40: #{fpn_head_forward.1} parent=5 // pred_fallthru
      _
  $region6: #{fpn_head_forward.1} parent=0 // loop_footer
    %s13 = sadd.s32 1, %s9
  $region7: #{fpn_head_forward.1} parent=0 // loop_footer_branch
    %8 = sbr.rel target = $region3
  $region8: #{fpn_head_forward.1} parent=0 // loop_exit
    _

</llo_original>
